<compile_context>
chip_gen: v6e
topology: v6e:2x2x1
jax: 0.10.0
libtpu: 0.0.40
codegen_flags: <defaults>
</compile_context>

<pallas_src>
import functools

import jax
import jax.numpy as jnp
from jax.experimental import pallas as pl
from jax.experimental.pallas import tpu as pltpu


def _round_up(n, m):
    return ((n + m - 1) // m) * m


def _cdiv(a, b):
    return -(-a // b)


def mlp_kernel(x_ref, w1_ref, b1_ref, w2_ref, b2_ref, w3_ref, b3_ref, out_ref):
    """Fused fc1->ReLU->fc2->ReLU->fc3 for one batch tile of TM rows.

    fc1/fc2 run on the MXU (operands cast in-kernel to the weight dtype,
    f32 accumulation); bias/ReLU stay in f32 on the VPU. fc3 (output dim 1)
    is a VPU multiply + lane reduction; the result is stored lane-dense as a
    (1, TM) block (batch on the lane axis).
    """
    mm_dtype = w1_ref.dtype                                      # bf16 or f32

    # In-kernel cast (cheap VPU op, hidden under the input DMA).
    x = x_ref[...].astype(mm_dtype)                              # (TM, D_in)

    # fc1 + ReLU  (dropout1 is identity at inference)
    h1 = jnp.dot(x, w1_ref[...], preferred_element_type=jnp.float32)
    h1 = jnp.maximum(h1 + b1_ref[...], 0.0)                      # (TM, H) f32

    # fc2 + ReLU  (dropout2 is identity at inference)
    h2 = jnp.dot(h1.astype(mm_dtype), w2_ref[...],
                 preferred_element_type=jnp.float32)
    h2 = jnp.maximum(h2 + b2_ref[...], 0.0)                      # (TM, 16) f32

    # fc3: N=1 -> MXU would be >99% idle; multiply + lane-reduce on VPU/XLU.
    w3_row = w3_ref[...]                                         # (1, 16) f32
    out_vec = jnp.sum(h2 * w3_row, axis=-1) + b3_ref[0]          # (TM,) f32

    # Lane-dense writeback: batch sits on the lane axis of the (1, TM) block.
    out_ref[...] = out_vec[None, :].astype(out_ref.dtype)


@functools.partial(jax.jit, static_argnames=("tm_max", "use_bf16"))
def neural_network_forward(x, params, *, tm_max=8192, use_bf16=True):
    """x: (batch, input_dim) f32 -> (batch, 1) f32 (eval-mode forward)."""
    w1, b1, w2, b2, w3, b3 = params
    batch, d_in = x.shape
    hidden = w1.shape[1]

    # ---- batch tiling ----------------------------------------------------
    # Tile rows are always a multiple of 128 so the lane-dense (1, tm) output
    # store is fully unmasked. For large batches we force an even number of
    # tiles (>= 2) so the parallel grid axis shards across v7x's 2 TensorCores.
    if batch <= 256:
        n_tiles = 1
        tm = _round_up(batch, 128)
    else:
        n_tiles = max(2, _cdiv(batch, tm_max))
        if n_tiles % 2:
            n_tiles += 1
        tm = _round_up(_cdiv(batch, n_tiles), 128)
    padded = n_tiles * tm
    if padded != batch:
        x = jnp.pad(x, ((0, padded - batch), (0, 0)))

    # ---- bf16 MXU operands (weights only; x is cast inside the kernel) ----
    mm_dtype = jnp.bfloat16 if use_bf16 else x.dtype
    w1_mm = w1.astype(mm_dtype)
    w2_mm = w2.astype(mm_dtype)

    w3_row = w3.reshape(1, -1).astype(jnp.float32)   # (1, 16): VPU fc3 weights
    b3_s = b3.reshape(-1).astype(jnp.float32)        # (1,): SMEM scalar bias

    weight_bytes = sum(int(a.size) * a.dtype.itemsize
                       for a in (w1_mm, b1, w2_mm, b2, w3_row, b3_s))
    cost = pl.CostEstimate(
        flops=2 * padded * (d_in * hidden + hidden * 16 + 16),
        transcendentals=0,
        bytes_accessed=padded * d_in * x.dtype.itemsize   # x stream
        + padded * 4                                       # output
        + weight_bytes,
    )

    out = pl.pallas_call(
        mlp_kernel,
        out_shape=jax.ShapeDtypeStruct((1, padded), jnp.float32),
        grid=(n_tiles,),
        in_specs=[
            pl.BlockSpec((tm, d_in), lambda i: (i, 0)),           # x tile
            pl.BlockSpec(w1_mm.shape, lambda i: (0, 0)),          # w1 (replicated)
            pl.BlockSpec(b1.shape, lambda i: (0, 0)),             # b1
            pl.BlockSpec(w2_mm.shape, lambda i: (0, 0)),          # w2
            pl.BlockSpec(b2.shape, lambda i: (0, 0)),             # b2
            pl.BlockSpec(w3_row.shape, lambda i: (0, 0)),         # w3 row
            pl.BlockSpec(memory_space=pltpu.MemorySpace.SMEM),    # b3 scalar
        ],
        out_specs=pl.BlockSpec((1, tm), lambda i: (0, i)),
        compiler_params=pltpu.CompilerParams(
            dimension_semantics=("parallel",),
            vmem_limit_bytes=32 * 1024 * 1024,
        ),
        cost_estimate=cost,
    )(x, w1_mm, b1, w2_mm, b2, w3_row, b3_s)

    return out[0, :batch].reshape(batch, 1)


def init_params(key, input_dim, hidden_dim):
    """PyTorch-style uniform init; weights already in (in_features, out_features)."""
    def linear(key, fan_in, fan_out):
        kw, kb = jax.random.split(key)
        bound = 1.0 / jnp.sqrt(fan_in)
        w = jax.random.uniform(kw, (fan_in, fan_out), jnp.float32, -bound, bound)
        b = jax.random.uniform(kb, (1, fan_out), jnp.float32, -bound, bound)
        return w, b

    k1, k2, k3 = jax.random.split(key, 3)
    w1, b1 = linear(k1, input_dim, hidden_dim)   # fc1: input_dim -> hidden_dim
    w2, b2 = linear(k2, hidden_dim, 16)          # fc2: hidden_dim -> 16
    w3, b3 = linear(k3, 16, 1)                   # fc3: 16 -> 1
    return (w1, b1, w2, b2, w3, b3)


def reference_forward(x, params, mm_dtype=jnp.float32):
    """Pure-JAX reference (eval-mode dropout = identity).

    mm_dtype lets us mimic the kernel's bf16 matmul operands (f32 accumulate)
    for a tight numerical comparison.
    """
    w1, b1, w2, b2, w3, b3 = params
    h1 = jnp.dot(x.astype(mm_dtype), w1.astype(mm_dtype),
                 preferred_element_type=jnp.float32)
    h1 = jnp.maximum(h1 + b1, 0.0)
    h2 = jnp.dot(h1.astype(mm_dtype), w2.astype(mm_dtype),
                 preferred_element_type=jnp.float32)
    h2 = jnp.maximum(h2 + b2, 0.0)
    return h2 @ w3 + b3


if __name__ == "__main__":
    input_dim = 32
    hidden_dim = 32

    key = jax.random.PRNGKey(0)
    kp, k1, k2, k3 = jax.random.split(key, 4)
    params = init_params(kp, input_dim, hidden_dim)

    def check(batch, kx):
        x = jax.random.normal(kx, (batch, input_dim), jnp.float32)
        out = jax.block_until_ready(neural_network_forward(x, params))
        assert out.shape == (batch, 1), out.shape
        # Tight check vs. a reference that mimics the kernel's bf16 operands.
        ref_bf16 = reference_forward(x, params, mm_dtype=jnp.bfloat16)
        assert jnp.allclose(out, ref_bf16, atol=1e-3, rtol=1e-3)
        # Loose check vs. the exact f32 forward (PyTorch eval-mode semantics).
        ref_f32 = reference_forward(x, params, mm_dtype=jnp.float32)
        assert jnp.allclose(out, ref_f32, atol=5e-2, rtol=5e-2)

    check(8, k1)      # small demo batch (single 128-row tile, padded)
    check(203, k2)    # non-multiple-of-128 batch, single-tile path
    check(300, k3)    # multi-tile path (2 tiles of 256 rows)

    print("KERNEL_OK")
</pallas_src>

<mosaic_0001>
module attributes {stable_mosaic.version = 11 : i64} {
  func.func @mlp_kernel(%arg0: i32, %arg1: memref<128x32xf32, #tpu.memory_space<vmem>>, %arg2: memref<32x32xbf16, #tpu.memory_space<vmem>>, %arg3: memref<1x32xf32, #tpu.memory_space<vmem>>, %arg4: memref<32x16xbf16, #tpu.memory_space<vmem>>, %arg5: memref<1x16xf32, #tpu.memory_space<vmem>>, %arg6: memref<1x16xf32, #tpu.memory_space<vmem>>, %arg7: memref<1xf32, #tpu.memory_space<smem>>, %arg8: memref<1x128xf32, #tpu.memory_space<vmem>>) attributes {dimension_semantics = [#tpu.dimension_semantics<parallel>], iteration_bounds = array<i64: 1>, scalar_prefetch = 0 : i64, scratch_operands = 0 : i64, tpu.core_type = #tpu.core_type<tc>, window_params = [{transform_indices = @transform_0, window_bounds = array<i64: 128, 32>}, {pipeline_mode = #tpu.pipeline_mode<synchronous>, transform_indices = @transform_1, window_bounds = array<i64: 32, 32>}, {pipeline_mode = #tpu.pipeline_mode<synchronous>, transform_indices = @transform_2, window_bounds = array<i64: 1, 32>}, {pipeline_mode = #tpu.pipeline_mode<synchronous>, transform_indices = @transform_3, window_bounds = array<i64: 32, 16>}, {pipeline_mode = #tpu.pipeline_mode<synchronous>, transform_indices = @transform_4, window_bounds = array<i64: 1, 16>}, {pipeline_mode = #tpu.pipeline_mode<synchronous>, transform_indices = @transform_5, window_bounds = array<i64: 1, 16>}, {transform_indices = @transform_6, window_bounds = array<i64: 1>}, {transform_indices = @transform_7, window_bounds = array<i64: 1, 128>}]} {
    %c0 = arith.constant 0 : index
    %c0_0 = arith.constant 0 : index
    %0 = vector.load %arg1[%c0, %c0_0] : memref<128x32xf32, #tpu.memory_space<vmem>>, vector<128x32xf32>
    %1 = arith.truncf %0 : vector<128x32xf32> to vector<128x32xbf16>
    %c0_1 = arith.constant 0 : index
    %c0_2 = arith.constant 0 : index
    %2 = vector.load %arg2[%c0_1, %c0_2] : memref<32x32xbf16, #tpu.memory_space<vmem>>, vector<32x32xbf16>
    %cst = arith.constant dense<0.000000e+00> : vector<128x32xf32>
    %3 = tpu.matmul %1, %2, %cst {dimension_numbers = #tpu.dot_dimension_numbers<[1], [0], [0], [1], [0, 0, 1, 1], [], []>} : vector<128x32xbf16>, vector<32x32xbf16>, vector<128x32xf32> -> vector<128x32xf32>
    %c0_3 = arith.constant 0 : index
    %c0_4 = arith.constant 0 : index
    %4 = vector.load %arg3[%c0_3, %c0_4] : memref<1x32xf32, #tpu.memory_space<vmem>>, vector<1x32xf32>
    %5 = vector.broadcast %4 : vector<1x32xf32> to vector<128x32xf32>
    %6 = arith.addf %3, %5 : vector<128x32xf32>
    %cst_5 = arith.constant 0.000000e+00 : f32
    %7 = vector.broadcast %cst_5 : f32 to vector<128x32xf32>
    %8 = arith.maximumf %6, %7 : vector<128x32xf32>
    %9 = arith.truncf %8 : vector<128x32xf32> to vector<128x32xbf16>
    %c0_6 = arith.constant 0 : index
    %c0_7 = arith.constant 0 : index
    %10 = vector.load %arg4[%c0_6, %c0_7] : memref<32x16xbf16, #tpu.memory_space<vmem>>, vector<32x16xbf16>
    %cst_8 = arith.constant dense<0.000000e+00> : vector<128x16xf32>
    %11 = tpu.matmul %9, %10, %cst_8 {dimension_numbers = #tpu.dot_dimension_numbers<[1], [0], [0], [1], [0, 0, 1, 1], [], []>} : vector<128x32xbf16>, vector<32x16xbf16>, vector<128x16xf32> -> vector<128x16xf32>
    %c0_9 = arith.constant 0 : index
    %c0_10 = arith.constant 0 : index
    %12 = vector.load %arg5[%c0_9, %c0_10] : memref<1x16xf32, #tpu.memory_space<vmem>>, vector<1x16xf32>
    %13 = vector.broadcast %12 : vector<1x16xf32> to vector<128x16xf32>
    %14 = arith.addf %11, %13 : vector<128x16xf32>
    %cst_11 = arith.constant 0.000000e+00 : f32
    %15 = vector.broadcast %cst_11 : f32 to vector<128x16xf32>
    %16 = arith.maximumf %14, %15 : vector<128x16xf32>
    %c0_12 = arith.constant 0 : index
    %c0_13 = arith.constant 0 : index
    %17 = vector.load %arg6[%c0_12, %c0_13] : memref<1x16xf32, #tpu.memory_space<vmem>>, vector<1x16xf32>
    %18 = vector.broadcast %17 : vector<1x16xf32> to vector<128x16xf32>
    %19 = arith.mulf %16, %18 : vector<128x16xf32>
    %cst_14 = arith.constant dense<0.000000e+00> : vector<128xf32>
    %20 = vector.multi_reduction <add>, %19, %cst_14 [1] : vector<128x16xf32> to vector<128xf32>
    %c0_15 = arith.constant 0 : index
    %21 = memref.load %arg7[%c0_15] : memref<1xf32, #tpu.memory_space<smem>>
    %22 = vector.broadcast %21 : f32 to vector<128xf32>
    %23 = arith.addf %20, %22 : vector<128xf32>
    %24 = vector.shape_cast %23 : vector<128xf32> to vector<1x128xf32>
    %c0_16 = arith.constant 0 : index
    %c0_17 = arith.constant 0 : index
    %25 = vector.load %arg8[%c0_16, %c0_17] : memref<1x128xf32, #tpu.memory_space<vmem>>, vector<1x128xf32>
    tpu.vector_store %arg8[%c0_16, %c0_17], %24 {strides = array<i32>} : memref<1x128xf32, #tpu.memory_space<vmem>>, vector<1x128xf32>,
    return
  }
  func.func @transform_0(%arg0: i32) -> (i32, i32) {
    %c0_i32 = arith.constant 0 : i32
    %c0_i32_0 = arith.constant 0 : i32
    return %arg0, %c0_i32 : i32, i32
  }
  func.func @transform_1(%arg0: i32) -> (i32, i32) {
    %c0_i32 = arith.constant 0 : i32
    %c0_i32_0 = arith.constant 0 : i32
    %c0_i32_1 = arith.constant 0 : i32
    return %c0_i32, %c0_i32_0 : i32, i32
  }
  func.func @transform_2(%arg0: i32) -> (i32, i32) {
    %c0_i32 = arith.constant 0 : i32
    %c0_i32_0 = arith.constant 0 : i32
    %c0_i32_1 = arith.constant 0 : i32
    return %c0_i32, %c0_i32_0 : i32, i32
  }
  func.func @transform_3(%arg0: i32) -> (i32, i32) {
    %c0_i32 = arith.constant 0 : i32
    %c0_i32_0 = arith.constant 0 : i32
    %c0_i32_1 = arith.constant 0 : i32
    return %c0_i32, %c0_i32_0 : i32, i32
  }
  func.func @transform_4(%arg0: i32) -> (i32, i32) {
    %c0_i32 = arith.constant 0 : i32
    %c0_i32_0 = arith.constant 0 : i32
    %c0_i32_1 = arith.constant 0 : i32
    return %c0_i32, %c0_i32_0 : i32, i32
  }
  func.func @transform_5(%arg0: i32) -> (i32, i32) {
    %c0_i32 = arith.constant 0 : i32
    %c0_i32_0 = arith.constant 0 : i32
    %c0_i32_1 = arith.constant 0 : i32
    return %c0_i32, %c0_i32_0 : i32, i32
  }
  func.func @transform_6(%arg0: i32) -> i32 {
    %c0_i32 = arith.constant 0 : i32
    %c0_i32_0 = arith.constant 0 : i32
    return %c0_i32 : i32
  }
  func.func @transform_7(%arg0: i32) -> (i32, i32) {
    %c0_i32 = arith.constant 0 : i32
    %c0_i32_0 = arith.constant 0 : i32
    return %c0_i32, %arg0 : i32, i32
  }
}

</mosaic_0001>

<llo_original>
// kernel: neural_network_forward.1
$region0: #{neural_network_forward.1}
  #allocation0 [shape = 'u32[]', space=smem, size = 0x4, offset = 0x4, fixed_abs, tag = 'smem constant byte address 0x4 - core index']
  #allocation1 [shape = 'u32[144,128]{1,0:T(1,128)}', space=vmem, size = 0x12000, scoped, tag = 'internal scratch']
  #allocation2 [shape = 'f32[1]{0:T(128)S(6)}', space=smem, size = 0x200, scoped, tag = 'scoped memory for neural_network_forward.1']
  %s0 = inlined_call_operand.vmem [shape: f32[128,32], index: 0, kind: input, shape index: {}]
  %s1 = inlined_call_operand.vmem [shape: bf16[32,32], index: 1, kind: input, shape index: {}]
  %s2 = inlined_call_operand.vmem [shape: f32[1,32], index: 2, kind: input, shape index: {}]
  %s3 = inlined_call_operand.vmem [shape: bf16[32,16], index: 3, kind: input, shape index: {}]
  %s4 = inlined_call_operand.vmem [shape: f32[1,16], index: 4, kind: input, shape index: {}]
  %s5 = inlined_call_operand.vmem [shape: f32[1,16], index: 5, kind: input, shape index: {}]
  %s6 = inlined_call_operand.<no memory space> [shape: f32[1], index: 6, kind: input, shape index: {}]
  %s7 = inlined_call_operand.vmem [shape: f32[1,128], index: 7, kind: output, shape index: {}]
  %s8 = sld [smem:[#allocation0]]
  $region38: #{neural_network_forward.1} parent=0
    _
  %s10 = ssub.s32 1, %s8
  %s11 = scalar_select 0, %s10, %s8
  %12 = sst [smem:[#allocation2]] %s6
  // Predicated region
  $region2: #{neural_network_forward.1} parent=0 // pred_check
    _
  $region3: #{neural_network_forward.1} parent=0 // pred_check_branch
    %14 = sbr.rel (0) target = $region5
  $region4: #{neural_network_forward.1} parent=0 // pred_region
    _
  $region5: #{neural_network_forward.1} parent=0 // pred_fallthru
    _
  // Predicated region
  $region6: #{neural_network_forward.1} parent=0 // pred_check
    _
  $region7: #{neural_network_forward.1} parent=0 // pred_check_branch
    %16 = sbr.rel (0) target = $region9
  $region8: #{neural_network_forward.1} parent=0 // pred_region
    _
  $region9: #{neural_network_forward.1} parent=0 // pred_fallthru
    _
  // Predicated region
  $region10: #{neural_network_forward.1} parent=0 // pred_check
    _
  $region11: #{neural_network_forward.1} parent=0 // pred_check_branch
    %18 = sbr.rel (0) target = $region13
  $region12: #{neural_network_forward.1} parent=0 // pred_region
    _
  $region13: #{neural_network_forward.1} parent=0 // pred_fallthru
    _
  // Predicated region
  $region14: #{neural_network_forward.1} parent=0 // pred_check
    _
  $region15: #{neural_network_forward.1} parent=0 // pred_check_branch
    %20 = sbr.rel (0) target = $region17
  $region16: #{neural_network_forward.1} parent=0 // pred_region
    _
  $region17: #{neural_network_forward.1} parent=0 // pred_fallthru
    _
  // Predicated region
  $region18: #{neural_network_forward.1} parent=0 // pred_check
    _
  $region19: #{neural_network_forward.1} parent=0 // pred_check_branch
    %22 = sbr.rel (0) target = $region21
  $region20: #{neural_network_forward.1} parent=0 // pred_region
    _
  $region21: #{neural_network_forward.1} parent=0 // pred_fallthru
    _
  // Predicated region
  $region22: #{neural_network_forward.1} parent=0 // pred_check
    _
  $region23: #{neural_network_forward.1} parent=0 // pred_check_branch
    %24 = sbr.rel (0) target = $region25
  $region24: #{neural_network_forward.1} parent=0 // pred_region
    _
  $region25: #{neural_network_forward.1} parent=0 // pred_fallthru
    _
  // Predicated region
  $region26: #{neural_network_forward.1} parent=0 // pred_check
    _
  $region27: #{neural_network_forward.1} parent=0 // pred_check_branch
    %26 = sbr.rel (0) target = $region29
  $region28: #{neural_network_forward.1} parent=0 // pred_region
    _
  $region29: #{neural_network_forward.1} parent=0 // pred_fallthru
    _
  %v28 = vld [vmem:[%s0] sm:$0xff]
  %v29 = vld [vmem:[%s0 + $0x8] sm:$0xff]
  %v30 = vld [vmem:[%s0 + $0x10] sm:$0xff]
  %v31 = vld [vmem:[%s0 + $0x18] sm:$0xff]
  %v32 = vld [vmem:[%s0 + $0x20] sm:$0xff]
  %v33 = vld [vmem:[%s0 + $0x28] sm:$0xff]
  %v34 = vld [vmem:[%s0 + $0x30] sm:$0xff]
  %v35 = vld [vmem:[%s0 + $0x38] sm:$0xff]
  %v36 = vld [vmem:[%s0 + $0x40] sm:$0xff]
  %v37 = vld [vmem:[%s0 + $0x48] sm:$0xff]
  %v38 = vld [vmem:[%s0 + $0x50] sm:$0xff]
  %v39 = vld [vmem:[%s0 + $0x58] sm:$0xff]
  %v40 = vld [vmem:[%s0 + $0x60] sm:$0xff]
  %v41 = vld [vmem:[%s0 + $0x68] sm:$0xff]
  %v42 = vld [vmem:[%s0 + $0x70] sm:$0xff]
  %v43 = vld [vmem:[%s0 + $0x78] sm:$0xff]
  %v44 = vpack.c.bf16 %v29, %v28
  %v45 = vpack.c.bf16 %v31, %v30
  %v46 = vpack.c.bf16 %v33, %v32
  %v47 = vpack.c.bf16 %v35, %v34
  %v48 = vpack.c.bf16 %v37, %v36
  %v49 = vpack.c.bf16 %v39, %v38
  %v50 = vpack.c.bf16 %v41, %v40
  %v51 = vpack.c.bf16 %v43, %v42
  %v52 = vld [vmem:[%s1] sm:$0xf]
  %v53 = vld [vmem:[%s1 + $0x4] sm:$0xf]
  %v54 = vld [vmem:[%s1 + $0x8] sm:$0xf]
  %v55 = vld [vmem:[%s1 + $0xc] sm:$0xf]
  %v56 = vld [vmem:[%s2] sm:$0x1]
  %v58 = vlaneseq
  %v59 = vshrl.u32 %v58, 7
  %v60 = vsub.s32 0, %v59
  %v61 = vrot.slane %v56, %v60
  %v67 = vunpack.c.l.b16 %v52
  %v68 = vunpack.c.l.b16 %v53
  %v69 = vunpack.c.l.b16 %v54
  %v70 = vunpack.c.l.b16 %v55
  %v71 = vpack.c.b16 %v68, %v67
  %v72 = vpack.c.b16 %v70, %v69
  %vm75 = vcmask 261120
  %v77 = vsel %vm75, %v44, 0
  %v80 = vsel %vm75, %v45, 0
  %v83 = vsel %vm75, %v46, 0
  %v86 = vsel %vm75, %v47, 0
  %v89 = vsel %vm75, %v48, 0
  %v92 = vsel %vm75, %v49, 0
  %v95 = vsel %vm75, %v50, 0
  %v98 = vsel %vm75, %v51, 0
  %100 = vmatprep.subr.bf16.mxu0 0
  %101 = vmatpush1.bf16.msra.mxu0 0
  %102 = vmatprep.subr.bf16.mxu0 0
  %103 = vmatpush1.bf16.msra.mxu0 0
  %104 = vmatprep.subr.bf16.mxu0 0
  %105 = vmatpush1.bf16.msra.mxu0 0
  %106 = vmatprep.subr.bf16.mxu0 0
  %107 = vmatpush1.bf16.msra.mxu0 0
  %108 = vmatprep.subr.bf16.mxu0 0
  %109 = vmatpush1.bf16.msra.mxu0 0
  %110 = vmatprep.subr.bf16.mxu0 0
  %111 = vmatpush1.bf16.msra.mxu0 0
  %112 = vmatprep.subr.bf16.mxu0 0
  %113 = vmatpush1.bf16.msra.mxu0 %v72
  %114 = vmatprep.subr.bf16.mxu0 0
  %115 = vmatpush1.bf16.msra.mxu0 %v71
  %116 = vmatprep.subr.bf16.mxu0 0
  %117 = vmatpush2.bf16.msra.mxu0 0
  %118 = vmatprep.subr.bf16.mxu0 0
  %119 = vmatpush2.bf16.msra.mxu0 0
  %120 = vmatprep.subr.bf16.mxu0 0
  %121 = vmatpush2.bf16.msra.mxu0 0
  %122 = vmatprep.subr.bf16.mxu0 0
  %123 = vmatpush2.bf16.msra.mxu0 0
  %124 = vmatprep.subr.bf16.mxu0 0
  %125 = vmatpush2.bf16.msra.mxu0 0
  %126 = vmatprep.subr.bf16.mxu0 0
  %127 = vmatpush2.bf16.msra.mxu0 0
  %128 = vmatprep.subr.bf16.mxu0 0
  %129 = vmatpush2.bf16.msra.mxu0 0
  %130 = vmatprep.subr.bf16.mxu0 0
  %131 = vmatpush2.bf16.msra.mxu0 0
  %132 = vmatprep.mubr.bf16.mxu0 0
  %133 = vmatmul.mubr.bf16.gmra.mxu0 %v77
  %v134 = vpop.f32.mrf.mxu0
  %v135 = vadd.f32 %v61, %v134
  %v136 = vpop.f32.mrf.mxu0
  %v137 = vpop.f32.mrf.mxu0
  %v138 = vadd.f32 %v61, %v137
  %v139 = vpop.f32.mrf.mxu0
  %140 = vmatprep.mubr.bf16.mxu0 0
  %141 = vmatmul.mubr.bf16.gmra.mxu0 %v80
  %v142 = vpop.f32.mrf.mxu0
  %v143 = vadd.f32 %v61, %v142
  %v144 = vpop.f32.mrf.mxu0
  %v145 = vpop.f32.mrf.mxu0
  %v146 = vadd.f32 %v61, %v145
  %v147 = vpop.f32.mrf.mxu0
  %148 = vmatprep.mubr.bf16.mxu0 0
  %149 = vmatmul.mubr.bf16.gmra.mxu0 %v83
  %v150 = vpop.f32.mrf.mxu0
  %v151 = vadd.f32 %v61, %v150
  %v152 = vpop.f32.mrf.mxu0
  %v153 = vpop.f32.mrf.mxu0
  %v154 = vadd.f32 %v61, %v153
  %v155 = vpop.f32.mrf.mxu0
  %156 = vmatprep.mubr.bf16.mxu0 0
  %157 = vmatmul.mubr.bf16.gmra.mxu0 %v86
  %v158 = vpop.f32.mrf.mxu0
  %v159 = vadd.f32 %v61, %v158
  %v160 = vpop.f32.mrf.mxu0
  %v161 = vpop.f32.mrf.mxu0
  %v162 = vadd.f32 %v61, %v161
  %v163 = vpop.f32.mrf.mxu0
  %164 = vmatprep.mubr.bf16.mxu0 0
  %165 = vmatmul.mubr.bf16.gmra.mxu0 %v89
  %v166 = vpop.f32.mrf.mxu0
  %v167 = vadd.f32 %v61, %v166
  %v168 = vpop.f32.mrf.mxu0
  %v169 = vpop.f32.mrf.mxu0
  %v170 = vadd.f32 %v61, %v169
  %v171 = vpop.f32.mrf.mxu0
  %172 = vmatprep.mubr.bf16.mxu0 0
  %173 = vmatmul.mubr.bf16.gmra.mxu0 %v92
  %v174 = vpop.f32.mrf.mxu0
  %v175 = vadd.f32 %v61, %v174
  %v176 = vpop.f32.mrf.mxu0
  %v177 = vpop.f32.mrf.mxu0
  %v178 = vadd.f32 %v61, %v177
  %v179 = vpop.f32.mrf.mxu0
  %180 = vmatprep.mubr.bf16.mxu0 0
  %181 = vmatmul.mubr.bf16.gmra.mxu0 %v95
  %v182 = vpop.f32.mrf.mxu0
  %v183 = vadd.f32 %v61, %v182
  %v184 = vpop.f32.mrf.mxu0
  %v185 = vpop.f32.mrf.mxu0
  %v186 = vadd.f32 %v61, %v185
  %v187 = vpop.f32.mrf.mxu0
  %188 = vmatprep.mubr.bf16.mxu0 0
  %189 = vmatmul.mubr.bf16.gmra.mxu0 %v98
  %v190 = vpop.f32.mrf.mxu0
  %v191 = vadd.f32 %v61, %v190
  %v192 = vpop.f32.mrf.mxu0
  %v193 = vpop.f32.mrf.mxu0
  %v194 = vadd.f32 %v61, %v193
  %v195 = vpop.f32.mrf.mxu0
  %196 = vdwg.mxu0
  %v197 = vmax.f32 %v135, 0.0
  %v198 = vmax.f32 %v138, 0.0
  %v199 = vmax.f32 %v143, 0.0
  %v200 = vmax.f32 %v146, 0.0
  %v201 = vmax.f32 %v151, 0.0
  %v202 = vmax.f32 %v154, 0.0
  %v203 = vmax.f32 %v159, 0.0
  %v204 = vmax.f32 %v162, 0.0
  %v205 = vmax.f32 %v167, 0.0
  %v206 = vmax.f32 %v170, 0.0
  %v207 = vmax.f32 %v175, 0.0
  %v208 = vmax.f32 %v178, 0.0
  %v209 = vmax.f32 %v183, 0.0
  %v210 = vmax.f32 %v186, 0.0
  %v211 = vmax.f32 %v191, 0.0
  %v212 = vmax.f32 %v194, 0.0
  %v213 = vpack.c.bf16 %v198, %v197
  %v214 = vpack.c.bf16 %v200, %v199
  %v215 = vpack.c.bf16 %v202, %v201
  %v216 = vpack.c.bf16 %v204, %v203
  %v217 = vpack.c.bf16 %v206, %v205
  %v218 = vpack.c.bf16 %v208, %v207
  %v219 = vpack.c.bf16 %v210, %v209
  %v220 = vpack.c.bf16 %v212, %v211
  %v221 = vld [vmem:[%s3] sm:$0xf]
  %v222 = vld [vmem:[%s3 + $0x4] sm:$0xf]
  %v223 = vld [vmem:[%s3 + $0x8] sm:$0xf]
  %v224 = vld [vmem:[%s3 + $0xc] sm:$0xf]
  %v225 = vld [vmem:[%s4] sm:$0x1]
  %v227 = vlaneseq
  %v228 = vshrl.u32 %v227, 7
  %v229 = vsub.s32 0, %v228
  %v230 = vrot.slane %v225, %v229
  %v236 = vunpack.c.l.b16 %v221
  %v237 = vunpack.c.l.b16 %v222
  %v238 = vunpack.c.l.b16 %v223
  %v239 = vunpack.c.l.b16 %v224
  %v240 = vpack.c.b16 %v237, %v236
  %v241 = vpack.c.b16 %v239, %v238
  %v245 = vsel %vm75, %v213, 0
  %v248 = vsel %vm75, %v214, 0
  %v251 = vsel %vm75, %v215, 0
  %v254 = vsel %vm75, %v216, 0
  %v257 = vsel %vm75, %v217, 0
  %v260 = vsel %vm75, %v218, 0
  %v263 = vsel %vm75, %v219, 0
  %v266 = vsel %vm75, %v220, 0
  %268 = vmatprep.subr.bf16.mxu0 0
  %269 = vmatpush1.bf16.msra.mxu0 0
  %270 = vmatprep.subr.bf16.mxu0 0
  %271 = vmatpush1.bf16.msra.mxu0 0
  %272 = vmatprep.subr.bf16.mxu0 0
  %273 = vmatpush1.bf16.msra.mxu0 0
  %274 = vmatprep.subr.bf16.mxu0 0
  %275 = vmatpush1.bf16.msra.mxu0 0
  %276 = vmatprep.subr.bf16.mxu0 0
  %277 = vmatpush1.bf16.msra.mxu0 0
  %278 = vmatprep.subr.bf16.mxu0 0
  %279 = vmatpush1.bf16.msra.mxu0 0
  %280 = vmatprep.subr.bf16.mxu0 0
  %281 = vmatpush1.bf16.msra.mxu0 %v241
  %282 = vmatprep.subr.bf16.mxu0 0
  %283 = vmatpush1.bf16.msra.mxu0 %v240
  %284 = vmatprep.subr.bf16.mxu0 0
  %285 = vmatpush2.bf16.msra.mxu0 0
  %286 = vmatprep.subr.bf16.mxu0 0
  %287 = vmatpush2.bf16.msra.mxu0 0
  %288 = vmatprep.subr.bf16.mxu0 0
  %289 = vmatpush2.bf16.msra.mxu0 0
  %290 = vmatprep.subr.bf16.mxu0 0
  %291 = vmatpush2.bf16.msra.mxu0 0
  %292 = vmatprep.subr.bf16.mxu0 0
  %293 = vmatpush2.bf16.msra.mxu0 0
  %294 = vmatprep.subr.bf16.mxu0 0
  %295 = vmatpush2.bf16.msra.mxu0 0
  %296 = vmatprep.subr.bf16.mxu0 0
  %297 = vmatpush2.bf16.msra.mxu0 0
  %298 = vmatprep.subr.bf16.mxu0 0
  %299 = vmatpush2.bf16.msra.mxu0 0
  %300 = vmatprep.mubr.bf16.mxu0 0
  %301 = vmatmul.mubr.bf16.gmra.mxu0 %v245
  %v302 = vpop.f32.mrf.mxu0
  %v303 = vadd.f32 %v230, %v302
  %v304 = vpop.f32.mrf.mxu0
  %v305 = vpop.f32.mrf.mxu0
  %v306 = vadd.f32 %v230, %v305
  %v307 = vpop.f32.mrf.mxu0
  %308 = vmatprep.mubr.bf16.mxu0 0
  %309 = vmatmul.mubr.bf16.gmra.mxu0 %v248
  %v310 = vpop.f32.mrf.mxu0
  %v311 = vadd.f32 %v230, %v310
  %v312 = vpop.f32.mrf.mxu0
  %v313 = vpop.f32.mrf.mxu0
  %v314 = vadd.f32 %v230, %v313
  %v315 = vpop.f32.mrf.mxu0
  %316 = vmatprep.mubr.bf16.mxu0 0
  %317 = vmatmul.mubr.bf16.gmra.mxu0 %v251
  %v318 = vpop.f32.mrf.mxu0
  %v319 = vadd.f32 %v230, %v318
  %v320 = vpop.f32.mrf.mxu0
  %v321 = vpop.f32.mrf.mxu0
  %v322 = vadd.f32 %v230, %v321
  %v323 = vpop.f32.mrf.mxu0
  %324 = vmatprep.mubr.bf16.mxu0 0
  %325 = vmatmul.mubr.bf16.gmra.mxu0 %v254
  %v326 = vpop.f32.mrf.mxu0
  %v327 = vadd.f32 %v230, %v326
  %v328 = vpop.f32.mrf.mxu0
  %v329 = vpop.f32.mrf.mxu0
  %v330 = vadd.f32 %v230, %v329
  %v331 = vpop.f32.mrf.mxu0
  %332 = vmatprep.mubr.bf16.mxu0 0
  %333 = vmatmul.mubr.bf16.gmra.mxu0 %v257
  %v334 = vpop.f32.mrf.mxu0
  %v335 = vadd.f32 %v230, %v334
  %v336 = vpop.f32.mrf.mxu0
  %v337 = vpop.f32.mrf.mxu0
  %v338 = vadd.f32 %v230, %v337
  %v339 = vpop.f32.mrf.mxu0
  %340 = vmatprep.mubr.bf16.mxu0 0
  %341 = vmatmul.mubr.bf16.gmra.mxu0 %v260
  %v342 = vpop.f32.mrf.mxu0
  %v343 = vadd.f32 %v230, %v342
  %v344 = vpop.f32.mrf.mxu0
  %v345 = vpop.f32.mrf.mxu0
  %v346 = vadd.f32 %v230, %v345
  %v347 = vpop.f32.mrf.mxu0
  %348 = vmatprep.mubr.bf16.mxu0 0
  %349 = vmatmul.mubr.bf16.gmra.mxu0 %v263
  %v350 = vpop.f32.mrf.mxu0
  %v351 = vadd.f32 %v230, %v350
  %v352 = vpop.f32.mrf.mxu0
  %v353 = vpop.f32.mrf.mxu0
  %v354 = vadd.f32 %v230, %v353
  %v355 = vpop.f32.mrf.mxu0
  %356 = vmatprep.mubr.bf16.mxu0 0
  %357 = vmatmul.mubr.bf16.gmra.mxu0 %v266
  %v358 = vpop.f32.mrf.mxu0
  %v359 = vadd.f32 %v230, %v358
  %v360 = vpop.f32.mrf.mxu0
  %v361 = vpop.f32.mrf.mxu0
  %v362 = vadd.f32 %v230, %v361
  %v363 = vpop.f32.mrf.mxu0
  %364 = vdwg.mxu0
  %v365 = vmax.f32 %v303, 0.0
  %v366 = vmax.f32 %v306, 0.0
  %v367 = vmax.f32 %v311, 0.0
  %v368 = vmax.f32 %v314, 0.0
  %v369 = vmax.f32 %v319, 0.0
  %v370 = vmax.f32 %v322, 0.0
  %v371 = vmax.f32 %v327, 0.0
  %v372 = vmax.f32 %v330, 0.0
  %v373 = vmax.f32 %v335, 0.0
  %v374 = vmax.f32 %v338, 0.0
  %v375 = vmax.f32 %v343, 0.0
  %v376 = vmax.f32 %v346, 0.0
  %v377 = vmax.f32 %v351, 0.0
  %v378 = vmax.f32 %v354, 0.0
  %v379 = vmax.f32 %v359, 0.0
  %v380 = vmax.f32 %v362, 0.0
  %v381 = vld [vmem:[%s5] sm:$0x1]
  %v383 = vlaneseq
  %v384 = vshrl.u32 %v383, 7
  %v385 = vsub.s32 0, %v384
  %v386 = vrot.slane %v381, %v385
  %v388 = vmul.f32 %v365, %v386
  %v389 = vmul.f32 %v366, %v386
  %v390 = vmul.f32 %v367, %v386
  %v391 = vmul.f32 %v368, %v386
  %v392 = vmul.f32 %v369, %v386
  %v393 = vmul.f32 %v370, %v386
  %v394 = vmul.f32 %v371, %v386
  %v395 = vmul.f32 %v372, %v386
  %v396 = vmul.f32 %v373, %v386
  %v397 = vmul.f32 %v374, %v386
  %v398 = vmul.f32 %v375, %v386
  %v399 = vmul.f32 %v376, %v386
  %v400 = vmul.f32 %v377, %v386
  %v401 = vmul.f32 %v378, %v386
  %v402 = vmul.f32 %v379, %v386
  %v403 = vmul.f32 %v380, %v386
  %vm404 = vcmask 130048
  %v405 = vsel %vm404, %v388, 0.0
  %406 = vadd.xlane.f32.xlu0 %v405
  %v407 = vpop.xlane.xlu0 %406
  %v408 = vsel %vm404, %v389, 0.0
  %409 = vadd.xlane.f32.xlu0 %v408
  %v410 = vpop.xlane.xlu0 %409
  %v411 = vsel %vm404, %v390, 0.0
  %412 = vadd.xlane.f32.xlu0 %v411
  %v413 = vpop.xlane.xlu0 %412
  %v414 = vsel %vm404, %v391, 0.0
  %415 = vadd.xlane.f32.xlu0 %v414
  %v416 = vpop.xlane.xlu0 %415
  %v417 = vsel %vm404, %v392, 0.0
  %418 = vadd.xlane.f32.xlu0 %v417
  %v419 = vpop.xlane.xlu0 %418
  %v420 = vsel %vm404, %v393, 0.0
  %421 = vadd.xlane.f32.xlu0 %v420
  %v422 = vpop.xlane.xlu0 %421
  %v423 = vsel %vm404, %v394, 0.0
  %424 = vadd.xlane.f32.xlu0 %v423
  %v425 = vpop.xlane.xlu0 %424
  %v426 = vsel %vm404, %v395, 0.0
  %427 = vadd.xlane.f32.xlu0 %v426
  %v428 = vpop.xlane.xlu0 %427
  %v429 = vsel %vm404, %v396, 0.0
  %430 = vadd.xlane.f32.xlu0 %v429
  %v431 = vpop.xlane.xlu0 %430
  %v432 = vsel %vm404, %v397, 0.0
  %433 = vadd.xlane.f32.xlu0 %v432
  %v434 = vpop.xlane.xlu0 %433
  %v435 = vsel %vm404, %v398, 0.0
  %436 = vadd.xlane.f32.xlu0 %v435
  %v437 = vpop.xlane.xlu0 %436
  %v438 = vsel %vm404, %v399, 0.0
  %439 = vadd.xlane.f32.xlu0 %v438
  %v440 = vpop.xlane.xlu0 %439
  %v441 = vsel %vm404, %v400, 0.0
  %442 = vadd.xlane.f32.xlu0 %v441
  %v443 = vpop.xlane.xlu0 %442
  %v444 = vsel %vm404, %v401, 0.0
  %445 = vadd.xlane.f32.xlu0 %v444
  %v446 = vpop.xlane.xlu0 %445
  %v447 = vsel %vm404, %v402, 0.0
  %448 = vadd.xlane.f32.xlu0 %v447
  %v449 = vpop.xlane.xlu0 %448
  %v450 = vsel %vm404, %v403, 0.0
  %451 = vadd.xlane.f32.xlu0 %v450
  %v452 = vpop.xlane.xlu0 %451
  %s453 = sld [smem:[#allocation2]]
  %v454 = vstv %s453
  %v455 = vadd.f32 %v407, %v454
  %v456 = vadd.f32 %v410, %v454
  %v457 = vadd.f32 %v413, %v454
  %v458 = vadd.f32 %v416, %v454
  %v459 = vadd.f32 %v419, %v454
  %v460 = vadd.f32 %v422, %v454
  %v461 = vadd.f32 %v425, %v454
  %v462 = vadd.f32 %v428, %v454
  %v463 = vadd.f32 %v431, %v454
  %v464 = vadd.f32 %v434, %v454
  %v465 = vadd.f32 %v437, %v454
  %v466 = vadd.f32 %v440, %v454
  %v467 = vadd.f32 %v443, %v454
  %v468 = vadd.f32 %v446, %v454
  %v469 = vadd.f32 %v449, %v454
  %v470 = vadd.f32 %v452, %v454
  %v487 = vlaneseq
  %v488 = vand.u32 %v487, 127
  %v489 = vlaneseq
  %v490 = vshrl.u32 %v489, 7
  %v491 = vsub.s32 %v488, %v490
  %v492 = vrot.slane %v455, %v491
  %v493 = vadd.s32 %v488, 4294967288
  %v494 = vlaneseq
  %v495 = vshrl.u32 %v494, 7
  %v496 = vsub.s32 %v493, %v495
  %v497 = vrot.slane %v456, %v496
  %vm498 = vcmask 130112
  %v499 = vsel %vm498, %v497, %v492
  %v500 = vadd.s32 %v488, 4294967280
  %v501 = vlaneseq
  %v502 = vshrl.u32 %v501, 7
  %v503 = vsub.s32 %v500, %v502
  %v504 = vrot.slane %v457, %v503
  %vm505 = vcmask 195712
  %v506 = vsel %vm505, %v504, %v499
  %v507 = vadd.s32 %v488, 4294967272
  %v508 = vlaneseq
  %v509 = vshrl.u32 %v508, 7
  %v510 = vsub.s32 %v507, %v509
  %v511 = vrot.slane %v458, %v510
  %vm512 = vcmask 261312
  %v513 = vsel %vm512, %v511, %v506
  %v514 = vadd.s32 %v488, 4294967264
  %v515 = vlaneseq
  %v516 = vshrl.u32 %v515, 7
  %v517 = vsub.s32 %v514, %v516
  %v518 = vrot.slane %v459, %v517
  %vm519 = vcmask 326912
  %v520 = vsel %vm519, %v518, %v513
  %v521 = vadd.s32 %v488, 4294967256
  %v522 = vlaneseq
  %v523 = vshrl.u32 %v522, 7
  %v524 = vsub.s32 %v521, %v523
  %v525 = vrot.slane %v460, %v524
  %vm526 = vcmask 392512
  %v527 = vsel %vm526, %v525, %v520
  %v528 = vadd.s32 %v488, 4294967248
  %v529 = vlaneseq
  %v530 = vshrl.u32 %v529, 7
  %v531 = vsub.s32 %v528, %v530
  %v532 = vrot.slane %v461, %v531
  %vm533 = vcmask 458112
  %v534 = vsel %vm533, %v532, %v527
  %v535 = vadd.s32 %v488, 4294967240
  %v536 = vlaneseq
  %v537 = vshrl.u32 %v536, 7
  %v538 = vsub.s32 %v535, %v537
  %v539 = vrot.slane %v462, %v538
  %vm540 = vcmask 523712
  %v541 = vsel %vm540, %v539, %v534
  %v542 = vadd.s32 %v488, 4294967232
  %v543 = vlaneseq
  %v544 = vshrl.u32 %v543, 7
  %v545 = vsub.s32 %v542, %v544
  %v546 = vrot.slane %v463, %v545
  %vm547 = vcmask 589312
  %v548 = vsel %vm547, %v546, %v541
  %v549 = vadd.s32 %v488, 4294967224
  %v550 = vlaneseq
  %v551 = vshrl.u32 %v550, 7
  %v552 = vsub.s32 %v549, %v551
  %v553 = vrot.slane %v464, %v552
  %vm554 = vcmask 654912
  %v555 = vsel %vm554, %v553, %v548
  %v556 = vadd.s32 %v488, 4294967216
  %v557 = vlaneseq
  %v558 = vshrl.u32 %v557, 7
  %v559 = vsub.s32 %v556, %v558
  %v560 = vrot.slane %v465, %v559
  %vm561 = vcmask 720512
  %v562 = vsel %vm561, %v560, %v555
  %v563 = vadd.s32 %v488, 4294967208
  %v564 = vlaneseq
  %v565 = vshrl.u32 %v564, 7
  %v566 = vsub.s32 %v563, %v565
  %v567 = vrot.slane %v466, %v566
  %vm568 = vcmask 786112
  %v569 = vsel %vm568, %v567, %v562
  %v570 = vadd.s32 %v488, 4294967200
  %v571 = vlaneseq
  %v572 = vshrl.u32 %v571, 7
  %v573 = vsub.s32 %v570, %v572
  %v574 = vrot.slane %v467, %v573
  %vm575 = vcmask 851712
  %v576 = vsel %vm575, %v574, %v569
  %v577 = vadd.s32 %v488, 4294967192
  %v578 = vlaneseq
  %v579 = vshrl.u32 %v578, 7
  %v580 = vsub.s32 %v577, %v579
  %v581 = vrot.slane %v468, %v580
  %vm582 = vcmask 917312
  %v583 = vsel %vm582, %v581, %v576
  %v584 = vadd.s32 %v488, 4294967184
  %v585 = vlaneseq
  %v586 = vshrl.u32 %v585, 7
  %v587 = vsub.s32 %v584, %v586
  %v588 = vrot.slane %v469, %v587
  %vm589 = vcmask 982912
  %v590 = vsel %vm589, %v588, %v583
  %v591 = vadd.s32 %v488, 4294967176
  %v592 = vlaneseq
  %v593 = vshrl.u32 %v592, 7
  %v594 = vsub.s32 %v591, %v593
  %v595 = vrot.slane %v470, %v594
  %vm596 = vcmask 1048512
  %v597 = vsel %vm596, %v595, %v590
  %599 = vst [vmem:[%s7] sm:$0x1] %v597
  // Predicated region
  $region30: #{neural_network_forward.1} parent=0 // pred_check
    _
  $region31: #{neural_network_forward.1} parent=0 // pred_check_branch
    %601 = sbr.rel (0) target = $region33
  $region32: #{neural_network_forward.1} parent=0 // pred_region
    _
  $region33: #{neural_network_forward.1} parent=0 // pred_fallthru
    _
  // Predicated region
  $region34: #{neural_network_forward.1} parent=0 // pred_check
    _
  $region35: #{neural_network_forward.1} parent=0 // pred_check_branch
    %603 = sbr.rel (0) target = $region37
  $region36: #{neural_network_forward.1} parent=0 // pred_region
    _
  $region37: #{neural_network_forward.1} parent=0 // pred_fallthru
    _

</llo_original>
